<compile_context>
chip_gen: v7x
topology: tpu7x:2x2x1
jax: 0.10.0
libtpu: 0.0.40
codegen_flags: <defaults>
</compile_context>

<pallas_src>
import functools
import math

import jax
import jax.numpy as jnp
from jax import lax
from jax.experimental import pallas as pl
from jax.experimental.pallas import tpu as pltpu

_LANES = 128      # lane (minor) dimension of every tile
_SUBLANES = 8     # sublane dimension of the per-core partial-sum block
_PAD_LOGIT = -1.0e4   # finite sentinel: exp(-|x|)=0, so bce=0 and weight=0 exactly


def _round_up(x, m):
    return (x + m - 1) // m * m


def _num_tensorcores():
    """Best-effort TensorCore-per-device count (1 on v5e/v6e, 2 on v4/v5p/v7x)."""
    try:
        dev = jax.devices()[0]
        if dev.platform != "tpu":
            return 1
        kind = dev.device_kind.lower().replace(" ", "")
        if any(t in kind for t in ("v2", "v3", "v5e", "v5lite", "v6e", "v6lite")):
            return 1
        if any(t in kind for t in ("v4", "v5p", "v7", "7x")):
            return 2
        return 1
    except Exception:
        return 1


def _pow_int(x, n):
    """x ** n for positive integer n via repeated squaring (VPU multiplies only)."""
    result = None
    base = x
    while n:
        if n & 1:
            result = base if result is None else result * base
        n >>= 1
        if n:
            base = base * base
    return result


def _apply_gamma(sig, gamma):
    g = float(gamma)
    if g == 0.0:
        return jnp.ones_like(sig)
    if g.is_integer() and 0.0 < g <= 16.0:
        return _pow_int(sig, int(g))      # gamma=2.0 -> sig * sig (one VPU mul)
    return sig ** g                       # non-integer gamma: EUP pow fallback


def _vfl_kernel(pred_ref, gt_ref, label_ref, out_ref, *,
                alpha, gamma, tm, tiles_per_core, rows_valid, all_full,
                approx_recip):
    c = pl.program_id(0)      # TensorCore-parallel axis (per-core partial sums)
    i = pl.program_id(1)      # sequential reduction axis over row tiles

    @pl.when(i == 0)
    def _():
        out_ref[...] = jnp.zeros_like(out_ref)

    # BCE always in float32 (matches the autocast(enabled=False) block).
    x = pred_ref[...].astype(jnp.float32)     # logits
    z = gt_ref[...].astype(jnp.float32)       # soft targets (gt_score)
    lbl = label_ref[...].astype(jnp.float32)  # label mask

    # Fused transcendentals: one exp, one (approx) reciprocal, one log / element.
    e = jnp.exp(-jnp.abs(x))
    one_plus_e = 1.0 + e
    r = pl.reciprocal(one_plus_e, approx=approx_recip)
    sig = jnp.where(x >= 0.0, r, e * r)                 # == sigmoid(x)

    a = alpha * _apply_gamma(sig, gamma)                # alpha * sigmoid(x)^gamma
    weight = lbl * (z - a) + a                          # == a*(1-lbl) + z*lbl
    # Numerically-stable BCE with logits: max(x,0) - x*z + log(1 + exp(-|x|)).
    bce = jnp.maximum(x, 0.0) - x * z + jnp.log(one_plus_e)
    val = bce * weight

    def _accum(v):
        # Fold (tm,128) -> (8,128) with VPU adds; final reduce happens in wrapper.
        out_ref[...] += v.reshape(tm // _SUBLANES, _SUBLANES, _LANES).sum(axis=0)

    if all_full:
        # Every tile slot covers valid rows only: mask-free hot loop.
        _accum(val)
    else:
        # Only boundary / out-of-range tiles pay for the row mask (pl.when-gated);
        # steady-state tiles take the unmasked branch.
        n_valid = rows_valid - (c * tiles_per_core + i) * tm   # small int32, no overflow

        @pl.when(n_valid >= tm)
        def _():
            _accum(val)

        @pl.when(n_valid < tm)
        def _():
            row_ids = lax.broadcasted_iota(jnp.int32, val.shape, 0)
            _accum(jnp.where(row_ids < n_valid, val, 0.0))


def varifocal_loss(pred_score, gt_score, label, alpha=0.75, gamma=2.0, *,
                   tm=2048, num_cores=None, approx_reciprocal=True):
    """Pallas TPU varifocal loss (returns a f32 scalar).

    Inputs may be any identical shape and any dtype (upcast to f32 in-kernel);
    passing bf16 pred/gt and int8/bf16 label cuts HBM traffic ~2.2x.
    `approx_reciprocal=True` (default) uses the EUP approximate reciprocal in the
    fused sigmoid (~1e-3 relative on sigmoid, negligible on the summed loss).
    """
    assert pred_score.shape == gt_score.shape == label.shape

    total = int(math.prod(pred_score.shape))
    if total == 0:
        return jnp.zeros((), jnp.float32)

    if num_cores is None:
        num_cores = _num_tensorcores()
    num_cores = max(1, int(num_cores))

    # Zero-copy fast path: no padding when the element count is lane-divisible
    # (typical detection heads).  Otherwise pad only the last partial row with a
    # sentinel that contributes exactly 0 (pred=-1e4, gt=label=0) -> no lane mask.
    pad_n = (-total) % _LANES
    rows = (total + pad_n) // _LANES

    if jnp.issubdtype(pred_score.dtype, jnp.floating):
        sentinel = _PAD_LOGIT
    elif jnp.issubdtype(pred_score.dtype, jnp.integer):
        sentinel = int(jnp.iinfo(pred_score.dtype).min)
    else:
        sentinel = _PAD_LOGIT

    def _prep(a, pad_value):
        flat = a.reshape(-1)
        if pad_n:
            flat = jnp.pad(flat, (0, pad_n), constant_values=pad_value)
        return flat.reshape(rows, _LANES)

    p2 = _prep(pred_score, sentinel)
    g2 = _prep(gt_score, 0)
    l2 = _prep(label, 0)

    # Row-tile size: large (HBM-roofline-friendly) for big inputs, clamped for
    # small ones.  Keep tm around 1-4K; with tm=2048 per-step buffers are
    # 3 inputs x 2 bufs x 1 MiB = 6 MiB, safe even on v7x's 64 MiB VMEM.
    rows_per_core = pl.cdiv(rows, num_cores)
    tm_eff = max(_SUBLANES, min(int(tm), _round_up(rows_per_core, _SUBLANES)))

    tiles = pl.cdiv(rows, tm_eff)
    num_cores = max(1, min(num_cores, tiles))
    tiles_per_core = pl.cdiv(tiles, num_cores)
    all_full = (num_cores * tiles_per_core * tm_eff == rows)

    last_block = tiles - 1

    def idx_map(c, i):
        t = c * tiles_per_core + i
        # Clamp tile slots beyond the last real tile (they are fully masked).
        return (jnp.minimum(t, last_block), 0)

    row_spec = pl.BlockSpec((tm_eff, _LANES), idx_map)
    # TODO(synk): if a trace ever shows exposed DMA on the tiny-tile path,
    # add pipeline_mode=pl.Buffered(3) to the input specs for tm_eff < 512.

    kernel = functools.partial(
        _vfl_kernel, alpha=float(alpha), gamma=float(gamma), tm=tm_eff,
        tiles_per_core=tiles_per_core, rows_valid=rows, all_full=all_full,
        approx_recip=bool(approx_reciprocal))

    vmem_limit = int(min(96 * 2**20, max(32 * 2**20, 12 * tm_eff * _LANES * 4)))

    partials = pl.pallas_call(
        kernel,
        # (num_cores * 8, 128) per-core lane/sublane partial sums.
        out_shape=jax.ShapeDtypeStruct((num_cores * _SUBLANES, _LANES), jnp.float32),
        grid_spec=pltpu.PrefetchScalarGridSpec(
            num_scalar_prefetch=0,
            grid=(num_cores, tiles_per_core),
            in_specs=[row_spec, row_spec, row_spec],
            out_specs=pl.BlockSpec((_SUBLANES, _LANES), lambda c, i: (c, 0)),
        ),
        compiler_params=pltpu.CompilerParams(
            dimension_semantics=("parallel", "arbitrary"),
            vmem_limit_bytes=vmem_limit,
        ),
    )(p2, g2, l2)

    # Single tiny cross-lane/core reduce outside the hot loop.
    return jnp.sum(partials)


def _varifocal_loss_ref(pred_score, gt_score, label, alpha=0.75, gamma=2.0):
    """Pure-JAX reference matching the PyTorch forward."""
    x = pred_score.astype(jnp.float32)
    z = gt_score.astype(jnp.float32)
    lbl = label.astype(jnp.float32)
    weight = alpha * jax.nn.sigmoid(x) ** gamma * (1.0 - lbl) + z * lbl
    bce = jnp.maximum(x, 0.0) - x * z + jnp.log1p(jnp.exp(-jnp.abs(x)))
    return jnp.sum(bce * weight)


if __name__ == "__main__":
    key = jax.random.PRNGKey(0)
    k1, k2, k3, k4, k5, k6 = jax.random.split(key, 6)

    # Lane-divisible shape -> zero-copy fast path. (batch, anchors, classes).
    B, A, C = 2, 64, 128
    pred_score = jax.random.normal(k1, (B, A, C), dtype=jnp.float32) * 2.0
    gt_score = jax.random.uniform(k2, (B, A, C), dtype=jnp.float32)
    label = (jax.random.uniform(k3, (B, A, C)) < 0.1).astype(jnp.float32)

    ref = _varifocal_loss_ref(pred_score, gt_score, label)

    # Exact-reciprocal path: tight tolerance.
    loss_exact = varifocal_loss(pred_score, gt_score, label, alpha=0.75, gamma=2.0,
                                approx_reciprocal=False)
    jax.block_until_ready(loss_exact)
    assert jnp.allclose(loss_exact, ref, rtol=1e-4, atol=1e-2), (loss_exact, ref)

    # Default (approx-reciprocal) path: looser tolerance (~1e-3 relative).
    loss_approx = varifocal_loss(pred_score, gt_score, label, alpha=0.75, gamma=2.0)
    jax.block_until_ready(loss_approx)
    assert jnp.allclose(loss_approx, ref, rtol=1e-2, atol=1e-2), (loss_approx, ref)

    # Forced 2-core split with an odd tile count: exercises the clamped
    # out-of-range tile slot and the pl.when-gated boundary-tile mask.
    loss_split = varifocal_loss(pred_score, gt_score, label, alpha=0.75, gamma=2.0,
                                tm=48, num_cores=2, approx_reciprocal=False)
    jax.block_until_ready(loss_split)
    assert jnp.allclose(loss_split, ref, rtol=1e-4, atol=1e-2), (loss_split, ref)

    # Non-lane-divisible shape: exercises the sentinel-padded remainder path.
    shp = (3, 37, 50)  # 5550 elements, not a multiple of 128
    ps2 = jax.random.normal(k4, shp, dtype=jnp.float32) * 2.0
    gs2 = jax.random.uniform(k5, shp, dtype=jnp.float32)
    lb2 = (jax.random.uniform(k6, shp) < 0.1).astype(jnp.float32)
    ref2 = _varifocal_loss_ref(ps2, gs2, lb2)
    loss2 = varifocal_loss(ps2, gs2, lb2, alpha=0.75, gamma=2.0,
                           approx_reciprocal=False)
    jax.block_until_ready(loss2)
    assert jnp.allclose(loss2, ref2, rtol=1e-4, atol=1e-2), (loss2, ref2)

    print("KERNEL_OK")
</pallas_src>

<mosaic_0001>
module attributes {stable_mosaic.version = 11 : i64} {
  func.func @_vfl_kernel(%arg0: i32, %arg1: i32, %arg2: memref<128x128xf32, #tpu.memory_space<vmem>>, %arg3: memref<128x128xf32, #tpu.memory_space<vmem>>, %arg4: memref<128x128xf32, #tpu.memory_space<vmem>>, %arg5: memref<8x128xf32, #tpu.memory_space<vmem>>) attributes {dimension_semantics = [#tpu.dimension_semantics<parallel>, #tpu.dimension_semantics<arbitrary>], iteration_bounds = array<i64: 1, 1>, scalar_prefetch = 0 : i64, scratch_operands = 0 : i64, tpu.core_type = #tpu.core_type<tc>, window_params = [{transform_indices = @transform_0, window_bounds = array<i64: 128, 128>}, {transform_indices = @transform_1, window_bounds = array<i64: 128, 128>}, {transform_indices = @transform_2, window_bounds = array<i64: 128, 128>}, {transform_indices = @transform_3, window_bounds = array<i64: 8, 128>}]} {
    %c0_i32 = arith.constant 0 : i32
    %0 = arith.cmpi eq, %arg1, %c0_i32 : i32
    %1 = arith.extui %0 : i1 to i32
    %c0_i32_0 = arith.constant 0 : i32
    %2 = arith.cmpi ne, %1, %c0_i32_0 : i32
    scf.if %2 {
      %cst_15 = arith.constant 0.000000e+00 : f32
      %35 = vector.broadcast %cst_15 : f32 to vector<8x128xf32>
      %c0_16 = arith.constant 0 : index
      %c0_17 = arith.constant 0 : index
      %36 = vector.load %arg5[%c0_16, %c0_17] : memref<8x128xf32, #tpu.memory_space<vmem>>, vector<8x128xf32>
      tpu.vector_store %arg5[%c0_16, %c0_17], %35 {strides = array<i32>} : memref<8x128xf32, #tpu.memory_space<vmem>>, vector<8x128xf32>,
    } else {
    }
    %c0 = arith.constant 0 : index
    %c0_1 = arith.constant 0 : index
    %3 = vector.load %arg2[%c0, %c0_1] : memref<128x128xf32, #tpu.memory_space<vmem>>, vector<128x128xf32>
    %c0_2 = arith.constant 0 : index
    %c0_3 = arith.constant 0 : index
    %4 = vector.load %arg3[%c0_2, %c0_3] : memref<128x128xf32, #tpu.memory_space<vmem>>, vector<128x128xf32>
    %c0_4 = arith.constant 0 : index
    %c0_5 = arith.constant 0 : index
    %5 = vector.load %arg4[%c0_4, %c0_5] : memref<128x128xf32, #tpu.memory_space<vmem>>, vector<128x128xf32>
    %6 = math.absf %3 : vector<128x128xf32>
    %cst = arith.constant 0.000000e+00 : f32
    %7 = vector.broadcast %cst : f32 to vector<128x128xf32>
    %8 = arith.subf %7, %6 : vector<128x128xf32>
    %9 = math.exp %8 : vector<128x128xf32>
    %cst_6 = arith.constant 1.000000e+00 : f32
    %10 = vector.broadcast %cst_6 : f32 to vector<128x128xf32>
    %11 = arith.addf %10, %9 : vector<128x128xf32>
    %12 = tpu.reciprocal %11 : vector<128x128xf32> -> vector<128x128xf32>
    %cst_7 = arith.constant 0.000000e+00 : f32
    %13 = vector.broadcast %cst_7 : f32 to vector<128x128xf32>
    %14 = arith.cmpf oge, %3, %13 : vector<128x128xf32>
    %15 = arith.mulf %9, %12 : vector<128x128xf32>
    %16 = arith.select %14, %12, %15 : vector<128x128xi1>, vector<128x128xf32>
    %17 = arith.mulf %16, %16 : vector<128x128xf32>
    %cst_8 = arith.constant 7.500000e-01 : f32
    %18 = vector.broadcast %cst_8 : f32 to vector<128x128xf32>
    %19 = arith.mulf %18, %17 : vector<128x128xf32>
    %20 = arith.subf %4, %19 : vector<128x128xf32>
    %21 = arith.mulf %5, %20 : vector<128x128xf32>
    %22 = arith.addf %21, %19 : vector<128x128xf32>
    %cst_9 = arith.constant 0.000000e+00 : f32
    %23 = vector.broadcast %cst_9 : f32 to vector<128x128xf32>
    %24 = arith.maximumf %3, %23 : vector<128x128xf32>
    %25 = arith.mulf %3, %4 : vector<128x128xf32>
    %26 = arith.subf %24, %25 : vector<128x128xf32>
    %27 = math.log %11 : vector<128x128xf32>
    %28 = arith.addf %26, %27 : vector<128x128xf32>
    %29 = arith.mulf %28, %22 : vector<128x128xf32>
    %c0_10 = arith.constant 0 : index
    %c0_11 = arith.constant 0 : index
    %30 = vector.load %arg5[%c0_10, %c0_11] : memref<8x128xf32, #tpu.memory_space<vmem>>, vector<8x128xf32>
    %31 = vector.shape_cast %29 : vector<128x128xf32> to vector<16x8x128xf32>
    %cst_12 = arith.constant dense<0.000000e+00> : vector<8x128xf32>
    %32 = vector.multi_reduction <add>, %31, %cst_12 [0] : vector<16x8x128xf32> to vector<8x128xf32>
    %33 = arith.addf %30, %32 : vector<8x128xf32>
    %c0_13 = arith.constant 0 : index
    %c0_14 = arith.constant 0 : index
    %34 = vector.load %arg5[%c0_13, %c0_14] : memref<8x128xf32, #tpu.memory_space<vmem>>, vector<8x128xf32>
    tpu.vector_store %arg5[%c0_13, %c0_14], %33 {strides = array<i32>} : memref<8x128xf32, #tpu.memory_space<vmem>>, vector<8x128xf32>,
    return
  }
  func.func @transform_0(%arg0: i32, %arg1: i32) -> (i32, i32) {
    %c1_i32 = arith.constant 1 : i32
    %0 = arith.muli %arg0, %c1_i32 : i32
    %1 = arith.addi %0, %arg1 : i32
    %c0_i32 = arith.constant 0 : i32
    %2 = arith.minsi %1, %c0_i32 : i32
    %c0_i32_0 = arith.constant 0 : i32
    %c0_i32_1 = arith.constant 0 : i32
    return %2, %c0_i32_0 : i32, i32
  }
  func.func @transform_1(%arg0: i32, %arg1: i32) -> (i32, i32) {
    %c1_i32 = arith.constant 1 : i32
    %0 = arith.muli %arg0, %c1_i32 : i32
    %1 = arith.addi %0, %arg1 : i32
    %c0_i32 = arith.constant 0 : i32
    %2 = arith.minsi %1, %c0_i32 : i32
    %c0_i32_0 = arith.constant 0 : i32
    %c0_i32_1 = arith.constant 0 : i32
    return %2, %c0_i32_0 : i32, i32
  }
  func.func @transform_2(%arg0: i32, %arg1: i32) -> (i32, i32) {
    %c1_i32 = arith.constant 1 : i32
    %0 = arith.muli %arg0, %c1_i32 : i32
    %1 = arith.addi %0, %arg1 : i32
    %c0_i32 = arith.constant 0 : i32
    %2 = arith.minsi %1, %c0_i32 : i32
    %c0_i32_0 = arith.constant 0 : i32
    %c0_i32_1 = arith.constant 0 : i32
    return %2, %c0_i32_0 : i32, i32
  }
  func.func @transform_3(%arg0: i32, %arg1: i32) -> (i32, i32) {
    %c0_i32 = arith.constant 0 : i32
    %c0_i32_0 = arith.constant 0 : i32
    return %arg0, %c0_i32 : i32, i32
  }
}

</mosaic_0001>

<llo_original>
// kernel: tpu_custom_call.1
$region0: #{tpu_custom_call.1}
  #allocation0 [shape = 'u32[]', space=smem, size = 0x4, offset = 0x4, fixed_abs, tag = 'smem constant byte address 0x4 - core index']
  #allocation1 [shape = 'u32[144,128]{1,0:T(1,128)}', space=vmem, size = 0x12000, scoped, tag = 'internal scratch']
  %s0 = inlined_call_operand.hbm [shape: f32[128,128], index: 0, kind: input, shape index: {}]
  %s1 = inlined_call_operand.hbm [shape: f32[128,128], index: 1, kind: input, shape index: {}]
  %s2 = inlined_call_operand.hbm [shape: f32[128,128], index: 2, kind: input, shape index: {}]
  %s3 = inlined_call_operand.hbm [shape: f32[8,128], index: 3, kind: output, shape index: {}]
  %s4 = sld [smem:[#allocation0]]
  $region38: #{tpu_custom_call.1} parent=0
    _
  %s6 = ssub.s32 1, %s4
  %s7 = scalar_select 0, %s6, %s4
  $region1: #{tpu_custom_call.1} parent=0
    #allocation2 [shape = 'u8[65536]{0}', space=vmem, size = 0x10000, scoped, tag = 'input window, operand 0, single buffered']
    #allocation3 [shape = 's32[1]{0}', space=sflag, size = 0x4, scoped, tag = 'scoped memory for tpu_custom_call.1']
    #allocation4 [shape = 's32[1]{0}', space=sflag, size = 0x4, scoped, tag = 'scoped memory for tpu_custom_call.1']
    #allocation5 [shape = 'u8[65536]{0}', space=vmem, size = 0x10000, scoped, tag = 'input window, operand 1, single buffered']
    #allocation6 [shape = 's32[1]{0}', space=sflag, size = 0x4, scoped, tag = 'scoped memory for tpu_custom_call.1']
    #allocation7 [shape = 'u8[65536]{0}', space=vmem, size = 0x10000, scoped, tag = 'input window, operand 2, single buffered']
    #allocation8 [shape = 'u8[4096]{0}', space=vmem, size = 0x1000, scoped, tag = 'output window, operand 0, single buffered']
    %8 = vsyncpa [#allocation3], 0
    %9 = vsyncpa [#allocation6], 0
    %10 = vsyncpa [#allocation4], 0
    // Predicated region
    $region2: #{tpu_custom_call.1} parent=1 // pred_check
      _
    $region3: #{tpu_custom_call.1} parent=1 // pred_check_branch
      %12 = sbr.rel (0) target = $region5
    $region4: #{tpu_custom_call.1} parent=1 // pred_region
      %s13 = sadd.s32 0, 0
      %p14 = scmp.lt.s32.totalorder %s13, 0
      %s15 = scalar_select %p14, %s13, 0
      %s16 = smul.u32 16, %s15
      %s18 = ssub.s32 2048, 2048
      %19 = vsyncadd [#allocation3], %s18
      %s20 = smul.addr %s16, 128
      %s21 = scalar_lea.hbm %s0, %s20
      %s22 = sshll.u32 [#allocation2], 4
      %s23 = int_to_ptr.vmem [resolvable:$true] %s22
      %28 = dma.hbm_to_vmem [thread:$0]  %s21, 2048, %s23, [#allocation3], 128, 128, 8
    $region5: #{tpu_custom_call.1} parent=1 // pred_fallthru
      _
    // Predicated region
    $region6: #{tpu_custom_call.1} parent=1 // pred_check
      _
    $region7: #{tpu_custom_call.1} parent=1 // pred_check_branch
      %30 = sbr.rel (0) target = $region9
    $region8: #{tpu_custom_call.1} parent=1 // pred_region
      %s31 = sadd.s32 0, 0
      %p32 = scmp.lt.s32.totalorder %s31, 0
      %s33 = scalar_select %p32, %s31, 0
      %s34 = smul.u32 16, %s33
      %s36 = ssub.s32 2048, 2048
      %37 = vsyncadd [#allocation6], %s36
      %s38 = smul.addr %s34, 128
      %s39 = scalar_lea.hbm %s1, %s38
      %s40 = sshll.u32 [#allocation5], 4
      %s41 = int_to_ptr.vmem [resolvable:$true] %s40
      %46 = dma.hbm_to_vmem [thread:$0]  %s39, 2048, %s41, [#allocation6], 128, 128, 8
    $region9: #{tpu_custom_call.1} parent=1 // pred_fallthru
      _
    // Predicated region
    $region10: #{tpu_custom_call.1} parent=1 // pred_check
      _
    $region11: #{tpu_custom_call.1} parent=1 // pred_check_branch
      %48 = sbr.rel (0) target = $region13
    $region12: #{tpu_custom_call.1} parent=1 // pred_region
      %s49 = sadd.s32 0, 0
      %p50 = scmp.lt.s32.totalorder %s49, 0
      %s51 = scalar_select %p50, %s49, 0
      %s52 = smul.u32 16, %s51
      %s54 = ssub.s32 2048, 2048
      %55 = vsyncadd [#allocation6], %s54
      %s56 = smul.addr %s52, 128
      %s57 = scalar_lea.hbm %s2, %s56
      %s58 = sshll.u32 [#allocation7], 4
      %s59 = int_to_ptr.vmem [resolvable:$true] %s58
      %64 = dma.hbm_to_vmem [thread:$0]  %s57, 2048, %s59, [#allocation6], 128, 128, 8
    $region13: #{tpu_custom_call.1} parent=1 // pred_fallthru
      _
    // Predicated region
    $region14: #{tpu_custom_call.1} parent=1 // pred_check
      _
    $region15: #{tpu_custom_call.1} parent=1 // pred_check_branch
      %66 = sbr.rel (0) target = $region17
    $region16: #{tpu_custom_call.1} parent=1 // pred_region
      %67 = dma.done [#allocation3], 2048
    $region17: #{tpu_custom_call.1} parent=1 // pred_fallthru
      _
    // Predicated region
    $region18: #{tpu_custom_call.1} parent=1 // pred_check
      _
    $region19: #{tpu_custom_call.1} parent=1 // pred_check_branch
      %69 = sbr.rel (0) target = $region21
    $region20: #{tpu_custom_call.1} parent=1 // pred_region
      %70 = dma.done [#allocation6], 2048
    $region21: #{tpu_custom_call.1} parent=1 // pred_fallthru
      _
    // Predicated region
    $region22: #{tpu_custom_call.1} parent=1 // pred_check
      _
    $region23: #{tpu_custom_call.1} parent=1 // pred_check_branch
      %72 = sbr.rel (0) target = $region25
    $region24: #{tpu_custom_call.1} parent=1 // pred_region
      %73 = dma.done [#allocation6], 2048
    $region25: #{tpu_custom_call.1} parent=1 // pred_fallthru
      _
    %s74 = sadd.s32 0, 0
    %p75 = scmp.lt.s32.totalorder %s74, 0
    %s76 = scalar_select %p75, %s74, 0
    %s77 = smul.u32 16, %s76
    %s78 = sadd.s32 0, 0
    %p79 = scmp.lt.s32.totalorder %s78, 0
    %s80 = scalar_select %p79, %s78, 0
    %s81 = smul.u32 16, %s80
    %s82 = sadd.s32 0, 0
    %p83 = scmp.lt.s32.totalorder %s82, 0
    %s84 = scalar_select %p83, %s82, 0
    %s85 = smul.u32 16, %s84
    %p86 = scmp.eq.s32.totalorder 0, 0
    // Predicated region
    $region26: #{tpu_custom_call.1} parent=1 // pred_check
      %p87 = pneg %p86
    $region27: #{tpu_custom_call.1} parent=1 // pred_check_branch
      %89 = sbr.rel (%p87) target = $region29
    $region28: #{tpu_custom_call.1} parent=1 // pred_region
      %90 = vst [vmem:[#allocation8] sm:$0xff] 0.0
    $region29: #{tpu_custom_call.1} parent=1 // pred_fallthru
      _
    %v91 = vld [vmem:[#allocation2] sm:$0xff]
    %v92 = vld [vmem:[#allocation2 + $0x8] sm:$0xff]
    %v93 = vld [vmem:[#allocation2 + $0x10] sm:$0xff]
    %v94 = vld [vmem:[#allocation2 + $0x18] sm:$0xff]
    %v95 = vld [vmem:[#allocation2 + $0x20] sm:$0xff]
    %v96 = vld [vmem:[#allocation2 + $0x28] sm:$0xff]
    %v97 = vld [vmem:[#allocation2 + $0x30] sm:$0xff]
    %v98 = vld [vmem:[#allocation2 + $0x38] sm:$0xff]
    %v99 = vld [vmem:[#allocation2 + $0x40] sm:$0xff]
    %v100 = vld [vmem:[#allocation2 + $0x48] sm:$0xff]
    %v101 = vld [vmem:[#allocation2 + $0x50] sm:$0xff]
    %v102 = vld [vmem:[#allocation2 + $0x58] sm:$0xff]
    %v103 = vld [vmem:[#allocation2 + $0x60] sm:$0xff]
    %v104 = vld [vmem:[#allocation2 + $0x68] sm:$0xff]
    %v105 = vld [vmem:[#allocation2 + $0x70] sm:$0xff]
    %v106 = vld [vmem:[#allocation2 + $0x78] sm:$0xff]
    %v107 = vld [vmem:[#allocation5] sm:$0xff]
    %v108 = vld [vmem:[#allocation5 + $0x8] sm:$0xff]
    %v109 = vld [vmem:[#allocation5 + $0x10] sm:$0xff]
    %v110 = vld [vmem:[#allocation5 + $0x18] sm:$0xff]
    %v111 = vld [vmem:[#allocation5 + $0x20] sm:$0xff]
    %v112 = vld [vmem:[#allocation5 + $0x28] sm:$0xff]
    %v113 = vld [vmem:[#allocation5 + $0x30] sm:$0xff]
    %v114 = vld [vmem:[#allocation5 + $0x38] sm:$0xff]
    %v115 = vld [vmem:[#allocation5 + $0x40] sm:$0xff]
    %v116 = vld [vmem:[#allocation5 + $0x48] sm:$0xff]
    %v117 = vld [vmem:[#allocation5 + $0x50] sm:$0xff]
    %v118 = vld [vmem:[#allocation5 + $0x58] sm:$0xff]
    %v119 = vld [vmem:[#allocation5 + $0x60] sm:$0xff]
    %v120 = vld [vmem:[#allocation5 + $0x68] sm:$0xff]
    %v121 = vld [vmem:[#allocation5 + $0x70] sm:$0xff]
    %v122 = vld [vmem:[#allocation5 + $0x78] sm:$0xff]
    %v123 = vld [vmem:[#allocation7] sm:$0xff]
    %v124 = vld [vmem:[#allocation7 + $0x8] sm:$0xff]
    %v125 = vld [vmem:[#allocation7 + $0x10] sm:$0xff]
    %v126 = vld [vmem:[#allocation7 + $0x18] sm:$0xff]
    %v127 = vld [vmem:[#allocation7 + $0x20] sm:$0xff]
    %v128 = vld [vmem:[#allocation7 + $0x28] sm:$0xff]
    %v129 = vld [vmem:[#allocation7 + $0x30] sm:$0xff]
    %v130 = vld [vmem:[#allocation7 + $0x38] sm:$0xff]
    %v131 = vld [vmem:[#allocation7 + $0x40] sm:$0xff]
    %v132 = vld [vmem:[#allocation7 + $0x48] sm:$0xff]
    %v133 = vld [vmem:[#allocation7 + $0x50] sm:$0xff]
    %v134 = vld [vmem:[#allocation7 + $0x58] sm:$0xff]
    %v135 = vld [vmem:[#allocation7 + $0x60] sm:$0xff]
    %v136 = vld [vmem:[#allocation7 + $0x68] sm:$0xff]
    %v137 = vld [vmem:[#allocation7 + $0x70] sm:$0xff]
    %v138 = vld [vmem:[#allocation7 + $0x78] sm:$0xff]
    %v139 = vand.u32 2147483647, %v91
    %v140 = vand.u32 2147483647, %v92
    %v141 = vand.u32 2147483647, %v93
    %v142 = vand.u32 2147483647, %v94
    %v143 = vand.u32 2147483647, %v95
    %v144 = vand.u32 2147483647, %v96
    %v145 = vand.u32 2147483647, %v97
    %v146 = vand.u32 2147483647, %v98
    %v147 = vand.u32 2147483647, %v99
    %v148 = vand.u32 2147483647, %v100
    %v149 = vand.u32 2147483647, %v101
    %v150 = vand.u32 2147483647, %v102
    %v151 = vand.u32 2147483647, %v103
    %v152 = vand.u32 2147483647, %v104
    %v153 = vand.u32 2147483647, %v105
    %v154 = vand.u32 2147483647, %v106
    %v155 = vsub.f32 0.0, %v139
    %v156 = vsub.f32 0.0, %v140
    %v157 = vsub.f32 0.0, %v141
    %v158 = vsub.f32 0.0, %v142
    %v159 = vsub.f32 0.0, %v143
    %v160 = vsub.f32 0.0, %v144
    %v161 = vsub.f32 0.0, %v145
    %v162 = vsub.f32 0.0, %v146
    %v163 = vsub.f32 0.0, %v147
    %v164 = vsub.f32 0.0, %v148
    %v165 = vsub.f32 0.0, %v149
    %v166 = vsub.f32 0.0, %v150
    %v167 = vsub.f32 0.0, %v151
    %v168 = vsub.f32 0.0, %v152
    %v169 = vsub.f32 0.0, %v153
    %v170 = vsub.f32 0.0, %v154
    %v171 = vmul.f32 %v155, 1.442695
    %v172 = vpow.pop %v171
    %v173 = vmul.f32 %v156, 1.442695
    %v174 = vpow.pop %v173
    %v175 = vmul.f32 %v157, 1.442695
    %v176 = vpow.pop %v175
    %v177 = vmul.f32 %v158, 1.442695
    %v178 = vpow.pop %v177
    %v179 = vmul.f32 %v159, 1.442695
    %v180 = vpow.pop %v179
    %v181 = vmul.f32 %v160, 1.442695
    %v182 = vpow.pop %v181
    %v183 = vmul.f32 %v161, 1.442695
    %v184 = vpow.pop %v183
    %v185 = vmul.f32 %v162, 1.442695
    %v186 = vpow.pop %v185
    %v187 = vmul.f32 %v163, 1.442695
    %v188 = vpow.pop %v187
    %v189 = vmul.f32 %v164, 1.442695
    %v190 = vpow.pop %v189
    %v191 = vmul.f32 %v165, 1.442695
    %v192 = vpow.pop %v191
    %v193 = vmul.f32 %v166, 1.442695
    %v194 = vpow.pop %v193
    %v195 = vmul.f32 %v167, 1.442695
    %v196 = vpow.pop %v195
    %v197 = vmul.f32 %v168, 1.442695
    %v198 = vpow.pop %v197
    %v199 = vmul.f32 %v169, 1.442695
    %v200 = vpow.pop %v199
    %v201 = vmul.f32 %v170, 1.442695
    %v202 = vpow.pop %v201
    %v203 = vadd.f32 %v172, 1.0
    %v204 = vadd.f32 %v174, 1.0
    %v205 = vadd.f32 %v176, 1.0
    %v206 = vadd.f32 %v178, 1.0
    %v207 = vadd.f32 %v180, 1.0
    %v208 = vadd.f32 %v182, 1.0
    %v209 = vadd.f32 %v184, 1.0
    %v210 = vadd.f32 %v186, 1.0
    %v211 = vadd.f32 %v188, 1.0
    %v212 = vadd.f32 %v190, 1.0
    %v213 = vadd.f32 %v192, 1.0
    %v214 = vadd.f32 %v194, 1.0
    %v215 = vadd.f32 %v196, 1.0
    %v216 = vadd.f32 %v198, 1.0
    %v217 = vadd.f32 %v200, 1.0
    %v218 = vadd.f32 %v202, 1.0
    %v219 = vrcp.pop %v203
    %v220 = vrcp.pop %v204
    %v221 = vrcp.pop %v205
    %v222 = vrcp.pop %v206
    %v223 = vrcp.pop %v207
    %v224 = vrcp.pop %v208
    %v225 = vrcp.pop %v209
    %v226 = vrcp.pop %v210
    %v227 = vrcp.pop %v211
    %v228 = vrcp.pop %v212
    %v229 = vrcp.pop %v213
    %v230 = vrcp.pop %v214
    %v231 = vrcp.pop %v215
    %v232 = vrcp.pop %v216
    %v233 = vrcp.pop %v217
    %v234 = vrcp.pop %v218
    %vm235 = vcmp.ge.f32.partialorder %v91, 0.0
    %vm236 = vcmp.ge.f32.partialorder %v92, 0.0
    %vm237 = vcmp.ge.f32.partialorder %v93, 0.0
    %vm238 = vcmp.ge.f32.partialorder %v94, 0.0
    %vm239 = vcmp.ge.f32.partialorder %v95, 0.0
    %vm240 = vcmp.ge.f32.partialorder %v96, 0.0
    %vm241 = vcmp.ge.f32.partialorder %v97, 0.0
    %vm242 = vcmp.ge.f32.partialorder %v98, 0.0
    %vm243 = vcmp.ge.f32.partialorder %v99, 0.0
    %vm244 = vcmp.ge.f32.partialorder %v100, 0.0
    %vm245 = vcmp.ge.f32.partialorder %v101, 0.0
    %vm246 = vcmp.ge.f32.partialorder %v102, 0.0
    %vm247 = vcmp.ge.f32.partialorder %v103, 0.0
    %vm248 = vcmp.ge.f32.partialorder %v104, 0.0
    %vm249 = vcmp.ge.f32.partialorder %v105, 0.0
    %vm250 = vcmp.ge.f32.partialorder %v106, 0.0
    %v251 = vmul.f32 %v172, %v219
    %v252 = vmul.f32 %v174, %v220
    %v253 = vmul.f32 %v176, %v221
    %v254 = vmul.f32 %v178, %v222
    %v255 = vmul.f32 %v180, %v223
    %v256 = vmul.f32 %v182, %v224
    %v257 = vmul.f32 %v184, %v225
    %v258 = vmul.f32 %v186, %v226
    %v259 = vmul.f32 %v188, %v227
    %v260 = vmul.f32 %v190, %v228
    %v261 = vmul.f32 %v192, %v229
    %v262 = vmul.f32 %v194, %v230
    %v263 = vmul.f32 %v196, %v231
    %v264 = vmul.f32 %v198, %v232
    %v265 = vmul.f32 %v200, %v233
    %v266 = vmul.f32 %v202, %v234
    %v267 = vsel %vm235, %v219, %v251
    %v268 = vsel %vm236, %v220, %v252
    %v269 = vsel %vm237, %v221, %v253
    %v270 = vsel %vm238, %v222, %v254
    %v271 = vsel %vm239, %v223, %v255
    %v272 = vsel %vm240, %v224, %v256
    %v273 = vsel %vm241, %v225, %v257
    %v274 = vsel %vm242, %v226, %v258
    %v275 = vsel %vm243, %v227, %v259
    %v276 = vsel %vm244, %v228, %v260
    %v277 = vsel %vm245, %v229, %v261
    %v278 = vsel %vm246, %v230, %v262
    %v279 = vsel %vm247, %v231, %v263
    %v280 = vsel %vm248, %v232, %v264
    %v281 = vsel %vm249, %v233, %v265
    %v282 = vsel %vm250, %v234, %v266
    %v283 = vmul.f32 %v267, %v267
    %v284 = vmul.f32 %v268, %v268
    %v285 = vmul.f32 %v269, %v269
    %v286 = vmul.f32 %v270, %v270
    %v287 = vmul.f32 %v271, %v271
    %v288 = vmul.f32 %v272, %v272
    %v289 = vmul.f32 %v273, %v273
    %v290 = vmul.f32 %v274, %v274
    %v291 = vmul.f32 %v275, %v275
    %v292 = vmul.f32 %v276, %v276
    %v293 = vmul.f32 %v277, %v277
    %v294 = vmul.f32 %v278, %v278
    %v295 = vmul.f32 %v279, %v279
    %v296 = vmul.f32 %v280, %v280
    %v297 = vmul.f32 %v281, %v281
    %v298 = vmul.f32 %v282, %v282
    %v299 = vmul.f32 %v283, 0.75
    %v300 = vmul.f32 %v284, 0.75
    %v301 = vmul.f32 %v285, 0.75
    %v302 = vmul.f32 %v286, 0.75
    %v303 = vmul.f32 %v287, 0.75
    %v304 = vmul.f32 %v288, 0.75
    %v305 = vmul.f32 %v289, 0.75
    %v306 = vmul.f32 %v290, 0.75
    %v307 = vmul.f32 %v291, 0.75
    %v308 = vmul.f32 %v292, 0.75
    %v309 = vmul.f32 %v293, 0.75
    %v310 = vmul.f32 %v294, 0.75
    %v311 = vmul.f32 %v295, 0.75
    %v312 = vmul.f32 %v296, 0.75
    %v313 = vmul.f32 %v297, 0.75
    %v314 = vmul.f32 %v298, 0.75
    %v315 = vsub.f32 %v107, %v299
    %v316 = vsub.f32 %v108, %v300
    %v317 = vsub.f32 %v109, %v301
    %v318 = vsub.f32 %v110, %v302
    %v319 = vsub.f32 %v111, %v303
    %v320 = vsub.f32 %v112, %v304
    %v321 = vsub.f32 %v113, %v305
    %v322 = vsub.f32 %v114, %v306
    %v323 = vsub.f32 %v115, %v307
    %v324 = vsub.f32 %v116, %v308
    %v325 = vsub.f32 %v117, %v309
    %v326 = vsub.f32 %v118, %v310
    %v327 = vsub.f32 %v119, %v311
    %v328 = vsub.f32 %v120, %v312
    %v329 = vsub.f32 %v121, %v313
    %v330 = vsub.f32 %v122, %v314
    %v331 = vmul.f32 %v123, %v315
    %v332 = vmul.f32 %v124, %v316
    %v333 = vmul.f32 %v125, %v317
    %v334 = vmul.f32 %v126, %v318
    %v335 = vmul.f32 %v127, %v319
    %v336 = vmul.f32 %v128, %v320
    %v337 = vmul.f32 %v129, %v321
    %v338 = vmul.f32 %v130, %v322
    %v339 = vmul.f32 %v131, %v323
    %v340 = vmul.f32 %v132, %v324
    %v341 = vmul.f32 %v133, %v325
    %v342 = vmul.f32 %v134, %v326
    %v343 = vmul.f32 %v135, %v327
    %v344 = vmul.f32 %v136, %v328
    %v345 = vmul.f32 %v137, %v329
    %v346 = vmul.f32 %v138, %v330
    %v347 = vadd.f32 %v331, %v299
    %v348 = vadd.f32 %v332, %v300
    %v349 = vadd.f32 %v333, %v301
    %v350 = vadd.f32 %v334, %v302
    %v351 = vadd.f32 %v335, %v303
    %v352 = vadd.f32 %v336, %v304
    %v353 = vadd.f32 %v337, %v305
    %v354 = vadd.f32 %v338, %v306
    %v355 = vadd.f32 %v339, %v307
    %v356 = vadd.f32 %v340, %v308
    %v357 = vadd.f32 %v341, %v309
    %v358 = vadd.f32 %v342, %v310
    %v359 = vadd.f32 %v343, %v311
    %v360 = vadd.f32 %v344, %v312
    %v361 = vadd.f32 %v345, %v313
    %v362 = vadd.f32 %v346, %v314
    %v363 = vmax.f32 %v91, 0.0
    %v364 = vmax.f32 %v92, 0.0
    %v365 = vmax.f32 %v93, 0.0
    %v366 = vmax.f32 %v94, 0.0
    %v367 = vmax.f32 %v95, 0.0
    %v368 = vmax.f32 %v96, 0.0
    %v369 = vmax.f32 %v97, 0.0
    %v370 = vmax.f32 %v98, 0.0
    %v371 = vmax.f32 %v99, 0.0
    %v372 = vmax.f32 %v100, 0.0
    %v373 = vmax.f32 %v101, 0.0
    %v374 = vmax.f32 %v102, 0.0
    %v375 = vmax.f32 %v103, 0.0
    %v376 = vmax.f32 %v104, 0.0
    %v377 = vmax.f32 %v105, 0.0
    %v378 = vmax.f32 %v106, 0.0
    %v379 = vmul.f32 %v91, %v107
    %v380 = vmul.f32 %v92, %v108
    %v381 = vmul.f32 %v93, %v109
    %v382 = vmul.f32 %v94, %v110
    %v383 = vmul.f32 %v95, %v111
    %v384 = vmul.f32 %v96, %v112
    %v385 = vmul.f32 %v97, %v113
    %v386 = vmul.f32 %v98, %v114
    %v387 = vmul.f32 %v99, %v115
    %v388 = vmul.f32 %v100, %v116
    %v389 = vmul.f32 %v101, %v117
    %v390 = vmul.f32 %v102, %v118
    %v391 = vmul.f32 %v103, %v119
    %v392 = vmul.f32 %v104, %v120
    %v393 = vmul.f32 %v105, %v121
    %v394 = vmul.f32 %v106, %v122
    %v395 = vsub.f32 %v363, %v379
    %v396 = vsub.f32 %v364, %v380
    %v397 = vsub.f32 %v365, %v381
    %v398 = vsub.f32 %v366, %v382
    %v399 = vsub.f32 %v367, %v383
    %v400 = vsub.f32 %v368, %v384
    %v401 = vsub.f32 %v369, %v385
    %v402 = vsub.f32 %v370, %v386
    %v403 = vsub.f32 %v371, %v387
    %v404 = vsub.f32 %v372, %v388
    %v405 = vsub.f32 %v373, %v389
    %v406 = vsub.f32 %v374, %v390
    %v407 = vsub.f32 %v375, %v391
    %v408 = vsub.f32 %v376, %v392
    %v409 = vsub.f32 %v377, %v393
    %v410 = vsub.f32 %v378, %v394
    %v411 = vlog2.pop %v203
    %v412 = vmul.f32 %v411, 0.6931472
    %v413 = vlog2.pop %v204
    %v414 = vmul.f32 %v413, 0.6931472
    %v415 = vlog2.pop %v205
    %v416 = vmul.f32 %v415, 0.6931472
    %v417 = vlog2.pop %v206
    %v418 = vmul.f32 %v417, 0.6931472
    %v419 = vlog2.pop %v207
    %v420 = vmul.f32 %v419, 0.6931472
    %v421 = vlog2.pop %v208
    %v422 = vmul.f32 %v421, 0.6931472
    %v423 = vlog2.pop %v209
    %v424 = vmul.f32 %v423, 0.6931472
    %v425 = vlog2.pop %v210
    %v426 = vmul.f32 %v425, 0.6931472
    %v427 = vlog2.pop %v211
    %v428 = vmul.f32 %v427, 0.6931472
    %v429 = vlog2.pop %v212
    %v430 = vmul.f32 %v429, 0.6931472
    %v431 = vlog2.pop %v213
    %v432 = vmul.f32 %v431, 0.6931472
    %v433 = vlog2.pop %v214
    %v434 = vmul.f32 %v433, 0.6931472
    %v435 = vlog2.pop %v215
    %v436 = vmul.f32 %v435, 0.6931472
    %v437 = vlog2.pop %v216
    %v438 = vmul.f32 %v437, 0.6931472
    %v439 = vlog2.pop %v217
    %v440 = vmul.f32 %v439, 0.6931472
    %v441 = vlog2.pop %v218
    %v442 = vmul.f32 %v441, 0.6931472
    %v443 = vadd.f32 %v395, %v412
    %v444 = vadd.f32 %v396, %v414
    %v445 = vadd.f32 %v397, %v416
    %v446 = vadd.f32 %v398, %v418
    %v447 = vadd.f32 %v399, %v420
    %v448 = vadd.f32 %v400, %v422
    %v449 = vadd.f32 %v401, %v424
    %v450 = vadd.f32 %v402, %v426
    %v451 = vadd.f32 %v403, %v428
    %v452 = vadd.f32 %v404, %v430
    %v453 = vadd.f32 %v405, %v432
    %v454 = vadd.f32 %v406, %v434
    %v455 = vadd.f32 %v407, %v436
    %v456 = vadd.f32 %v408, %v438
    %v457 = vadd.f32 %v409, %v440
    %v458 = vadd.f32 %v410, %v442
    %v459 = vmul.f32 %v443, %v347
    %v460 = vmul.f32 %v444, %v348
    %v461 = vmul.f32 %v445, %v349
    %v462 = vmul.f32 %v446, %v350
    %v463 = vmul.f32 %v447, %v351
    %v464 = vmul.f32 %v448, %v352
    %v465 = vmul.f32 %v449, %v353
    %v466 = vmul.f32 %v450, %v354
    %v467 = vmul.f32 %v451, %v355
    %v468 = vmul.f32 %v452, %v356
    %v469 = vmul.f32 %v453, %v357
    %v470 = vmul.f32 %v454, %v358
    %v471 = vmul.f32 %v455, %v359
    %v472 = vmul.f32 %v456, %v360
    %v473 = vmul.f32 %v457, %v361
    %v474 = vmul.f32 %v458, %v362
    %v475 = vld [vmem:[#allocation8] sm:$0xff]
    %v476 = vadd.f32 %v459, %v460
    %v477 = vadd.f32 %v476, %v461
    %v478 = vadd.f32 %v477, %v462
    %v479 = vadd.f32 %v478, %v463
    %v480 = vadd.f32 %v479, %v464
    %v481 = vadd.f32 %v480, %v465
    %v482 = vadd.f32 %v481, %v466
    %v483 = vadd.f32 %v482, %v467
    %v484 = vadd.f32 %v483, %v468
    %v485 = vadd.f32 %v484, %v469
    %v486 = vadd.f32 %v485, %v470
    %v487 = vadd.f32 %v486, %v471
    %v488 = vadd.f32 %v487, %v472
    %v489 = vadd.f32 %v488, %v473
    %v490 = vadd.f32 %v489, %v474
    %v491 = vadd.f32 %v475, %v490
    %492 = vst [vmem:[#allocation8] sm:$0xff] %v491
    // Predicated region
    $region30: #{tpu_custom_call.1} parent=1 // pred_check
      _
    $region31: #{tpu_custom_call.1} parent=1 // pred_check_branch
      %494 = sbr.rel (0) target = $region33
    $region32: #{tpu_custom_call.1} parent=1 // pred_region
      %s496 = ssub.s32 128, 128
      %497 = vsyncadd [#allocation4], %s496
      %s499 = sshll.u32 [#allocation8], 4
      %s500 = int_to_ptr.vmem [resolvable:$true] %s499
      %502 = dma.vmem_to_hbm [thread:$0]  %s500, 128, %s3, [#allocation4]
    $region33: #{tpu_custom_call.1} parent=1 // pred_fallthru
      _
    // Predicated region
    $region34: #{tpu_custom_call.1} parent=1 // pred_check
      _
    $region35: #{tpu_custom_call.1} parent=1 // pred_check_branch
      %504 = sbr.rel (0) target = $region37
    $region36: #{tpu_custom_call.1} parent=1 // pred_region
      %505 = dma.done [#allocation4], 128
    $region37: #{tpu_custom_call.1} parent=1 // pred_fallthru
      _
    %506 = vsyncpa [#allocation3], 1
    %507 = vsyncpa [#allocation6], 1
    %508 = vsyncpa [#allocation4], 1

</llo_original>
